<compile_context>
chip_gen: v7x
topology: tpu7x:2x2x1
jax: 0.10.0
libtpu: 0.0.40
codegen_flags: <defaults>
</compile_context>

<pallas_src>
import jax
import jax.numpy as jnp
from jax.experimental import pallas as pl
from jax.experimental.pallas import tpu as pltpu

INPUT_SIZE = 6
TCN_OUT = 10
HIDDEN = 10
OUTPUT = 3
K = 3                         # conv kernel size
PAD = (K - 1) * 1             # padding = (kernel_size - 1) * dilation = 2
L1 = 1 + 2 * PAD - (K - 1)    # = 3 (length after tcn1)
L2 = L1 + 2 * PAD - (K - 1)   # = 5 (length after tcn2)
G = 4 * HIDDEN                # fused LSTM gate width (i, f, g, o)


def pongnet_kernel(x_ref, w1_ref, b1_ref, w2_ref, b2_ref,
                   wihb_ref, bg_ref, whh_ref, wfc_ref, bfc_ref, out_ref):
    x = x_ref[...]                                    # (Nt, 6)
    n = x.shape[0]

    # ---- TCN1: all 3 output timesteps in one matmul (taps lane-concatenated).
    h1 = jnp.maximum(
        jnp.dot(x, w1_ref[...], preferred_element_type=jnp.float32) + b1_ref[...],
        0.0)                                          # (Nt, 3*10)

    # ---- TCN2: one block matmul; zero blocks encode the zero-padding taps.
    h2 = jnp.maximum(
        jnp.dot(h1, w2_ref[...], preferred_element_type=jnp.float32) + b2_ref[...],
        0.0)                                          # (Nt, 5*10)

    # ---- LSTM input projections for all 5 timesteps + fused gate bias,
    # hoisted off the recurrence (block-diagonal Wih over timesteps).
    ih = (jnp.dot(h2, wihb_ref[...], preferred_element_type=jnp.float32)
          + bg_ref[...])                              # (Nt, 5*40)

    # ---- LSTM recurrence (PyTorch gate order i, f, g, o), keep last h only.
    whh = whh_ref[...]                                # (10, 40) loaded once
    h = jnp.zeros((n, HIDDEN), jnp.float32)
    c = jnp.zeros((n, HIDDEN), jnp.float32)
    for t in range(L2):
        z = ih[:, t * G:(t + 1) * G] + jnp.dot(
            h, whh, preferred_element_type=jnp.float32)          # (Nt, 40)
        sz = jax.nn.sigmoid(z)                                   # one EUP pass
        i_g = sz[:, 0:HIDDEN]
        f_g = sz[:, HIDDEN:2 * HIDDEN]
        o_g = sz[:, 3 * HIDDEN:4 * HIDDEN]
        g_g = jnp.tanh(z[:, 2 * HIDDEN:3 * HIDDEN])
        c = f_g * c + i_g * g_g
        h = o_g * jnp.tanh(c)

    # ---- FC + softmax over classes (dim=1).
    logits = (jnp.dot(h, wfc_ref[...], preferred_element_type=jnp.float32)
              + bfc_ref[...])                          # (Nt, 3)
    logits = logits - jnp.max(logits, axis=1, keepdims=True)
    e = jnp.exp(logits)
    out_ref[...] = e * pl.reciprocal(jnp.sum(e, axis=1, keepdims=True),
                                     approx=False)


def prepare_kernel_params(p):
    """Repack PyTorch-layout params into lane-fused, matmul-friendly layouts."""
    H = HIDDEN
    w1 = jnp.transpose(p['conv1_w'], (2, 1, 0))       # (K, Cin, Cout)
    w2 = jnp.transpose(p['conv2_w'], (2, 1, 0))       # (K, Cin, Cout)

    # TCN1: length-1 real input -> output step t uses tap k = PAD - t.
    w1c = jnp.concatenate([w1[PAD - t] for t in range(L1)], axis=1)     # (6, 30)
    b1c = jnp.tile(p['conv1_b'].reshape(1, TCN_OUT), (1, L1))           # (1, 30)

    # TCN2: block (src_t, out_t) = w2[k] with k = PAD + src_t - out_t (else 0).
    zero_blk = jnp.zeros((TCN_OUT, TCN_OUT), jnp.float32)
    rows = []
    for src_t in range(L1):
        row = []
        for out_t in range(L2):
            k = PAD + src_t - out_t
            row.append(w2[k] if 0 <= k < K else zero_blk)
        rows.append(jnp.concatenate(row, axis=1))
    w2c = jnp.concatenate(rows, axis=0)                                 # (30, 50)
    b2c = jnp.tile(p['conv2_b'].reshape(1, TCN_OUT), (1, L2))           # (1, 50)

    # LSTM: fused gates along lanes (PyTorch order i,f,g,o is preserved by .T).
    wih_cat = p['lstm_wih'].T                                           # (10, 40)
    whh_cat = p['lstm_whh'].T                                           # (10, 40)
    bg_cat = (p['lstm_bih'] + p['lstm_bhh']).reshape(1, G)              # (1, 40)

    # Block-diagonal Wih over the 5 timesteps: (50, 200).
    zero_g = jnp.zeros((TCN_OUT, G), jnp.float32)
    wihb = jnp.concatenate(
        [jnp.concatenate([wih_cat if s == t else zero_g for s in range(L2)],
                         axis=1) for t in range(L2)],
        axis=0)                                                         # (50, 200)
    bgall = jnp.tile(bg_cat, (1, L2))                                   # (1, 200)

    return dict(
        w1c=w1c, b1c=b1c, w2c=w2c, b2c=b2c,
        wihb=wihb, bgall=bgall, whhc=whh_cat,
        wfc=p['fc_w'].T,                                                # (10, 3)
        bfc=p['fc_b'].reshape(1, OUTPUT),
    )


def _full_spec(a):
    nd = a.ndim
    return pl.BlockSpec(a.shape, lambda i, _nd=nd: (0,) * _nd)


def pongnet_forward(x, kp, tile_n=1024):
    n = x.shape[0]
    # Batch tile: multiple of 8 (sublane), capped at tile_n; pad batch if needed.
    tile = min(tile_n, ((n + 7) // 8) * 8)
    n_pad = ((n + tile - 1) // tile) * tile
    xp = x if n_pad == n else jnp.pad(x, ((0, n_pad - n), (0, 0)))

    weights = (kp['w1c'], kp['b1c'], kp['w2c'], kp['b2c'],
               kp['wihb'], kp['bgall'], kp['whhc'], kp['wfc'], kp['bfc'])

    out = pl.pallas_call(
        pongnet_kernel,
        out_shape=jax.ShapeDtypeStruct((n_pad, OUTPUT), jnp.float32),
        grid_spec=pltpu.PrefetchScalarGridSpec(
            num_scalar_prefetch=0,
            grid=(n_pad // tile,),
            in_specs=[pl.BlockSpec((tile, INPUT_SIZE), lambda i: (i, 0))]
                     + [_full_spec(w) for w in weights],
            out_specs=pl.BlockSpec((tile, OUTPUT), lambda i: (i, 0)),
        ),
        compiler_params=pltpu.CompilerParams(
            dimension_semantics=("parallel",)),   # shards batch across TCs on v7x
    )(xp, *weights)
    return out[:n]


def reference_forward(x, p):
    """Pure-JAX reference with PyTorch semantics (independent of kernel layout)."""
    def conv1d(x_ncl, W, b, pad):
        xp = jnp.pad(x_ncl, ((0, 0), (0, 0), (pad, pad)))
        Cout, _, Kk = W.shape
        Lout = xp.shape[2] - Kk + 1
        out = jnp.stack(
            [jnp.einsum('nck,ock->no', xp[:, :, t:t + Kk], W) for t in range(Lout)],
            axis=2)
        return out + b[None, :, None]

    h = x[:, :, None]                                 # unsqueeze(2) -> (N, 6, 1)
    h = jax.nn.relu(conv1d(h, p['conv1_w'], p['conv1_b'], PAD))
    h = jax.nn.relu(conv1d(h, p['conv2_w'], p['conv2_b'], PAD))
    seq = jnp.transpose(h, (0, 2, 1))                 # (N, L, C)
    H = HIDDEN
    hh = jnp.zeros((x.shape[0], H), jnp.float32)
    cc = jnp.zeros((x.shape[0], H), jnp.float32)
    for t in range(seq.shape[1]):
        g = (seq[:, t] @ p['lstm_wih'].T + p['lstm_bih']
             + hh @ p['lstm_whh'].T + p['lstm_bhh'])
        i = jax.nn.sigmoid(g[:, :H])
        f = jax.nn.sigmoid(g[:, H:2 * H])
        gg = jnp.tanh(g[:, 2 * H:3 * H])
        o = jax.nn.sigmoid(g[:, 3 * H:])
        cc = f * cc + i * gg
        hh = o * jnp.tanh(cc)
    logits = hh @ p['fc_w'].T + p['fc_b']
    return jax.nn.softmax(logits, axis=1)


if __name__ == "__main__":
    key = jax.random.PRNGKey(0)
    keys = jax.random.split(key, 11)

    def u(k, shape, fan_in):
        bound = 1.0 / float(fan_in) ** 0.5
        return jax.random.uniform(k, shape, jnp.float32, -bound, bound)

    raw = {
        'conv1_w': u(keys[0], (TCN_OUT, INPUT_SIZE, K), INPUT_SIZE * K),
        'conv1_b': u(keys[1], (TCN_OUT,), INPUT_SIZE * K),
        'conv2_w': u(keys[2], (TCN_OUT, TCN_OUT, K), TCN_OUT * K),
        'conv2_b': u(keys[3], (TCN_OUT,), TCN_OUT * K),
        'lstm_wih': u(keys[4], (4 * HIDDEN, TCN_OUT), HIDDEN),
        'lstm_whh': u(keys[5], (4 * HIDDEN, HIDDEN), HIDDEN),
        'lstm_bih': u(keys[6], (4 * HIDDEN,), HIDDEN),
        'lstm_bhh': u(keys[7], (4 * HIDDEN,), HIDDEN),
        'fc_w': u(keys[8], (OUTPUT, HIDDEN), HIDDEN),
        'fc_b': u(keys[9], (OUTPUT,), HIDDEN),
    }
    x = jax.random.normal(keys[10], (8, INPUT_SIZE), jnp.float32)

    kp = prepare_kernel_params(raw)
    out = jax.block_until_ready(pongnet_forward(x, kp))
    ref = jax.block_until_ready(reference_forward(x, raw))
    assert out.shape == (8, OUTPUT)
    assert jnp.allclose(out, ref, atol=1e-5, rtol=1e-5)
    print("KERNEL_OK")
</pallas_src>

<mosaic_0001>
module attributes {stable_mosaic.version = 11 : i64} {
  func.func @pongnet_kernel(%arg0: i32, %arg1: memref<8x6xf32, #tpu.memory_space<vmem>>, %arg2: memref<6x30xf32, #tpu.memory_space<vmem>>, %arg3: memref<1x30xf32, #tpu.memory_space<vmem>>, %arg4: memref<30x50xf32, #tpu.memory_space<vmem>>, %arg5: memref<1x50xf32, #tpu.memory_space<vmem>>, %arg6: memref<50x200xf32, #tpu.memory_space<vmem>>, %arg7: memref<1x200xf32, #tpu.memory_space<vmem>>, %arg8: memref<10x40xf32, #tpu.memory_space<vmem>>, %arg9: memref<10x3xf32, #tpu.memory_space<vmem>>, %arg10: memref<1x3xf32, #tpu.memory_space<vmem>>, %arg11: memref<8x3xf32, #tpu.memory_space<vmem>>) attributes {dimension_semantics = [#tpu.dimension_semantics<parallel>], iteration_bounds = array<i64: 1>, scalar_prefetch = 0 : i64, scratch_operands = 0 : i64, tpu.core_type = #tpu.core_type<tc>, window_params = [{transform_indices = @transform_0, window_bounds = array<i64: 8, 6>}, {pipeline_mode = #tpu.pipeline_mode<synchronous>, transform_indices = @transform_1, window_bounds = array<i64: 6, 30>}, {pipeline_mode = #tpu.pipeline_mode<synchronous>, transform_indices = @transform_2, window_bounds = array<i64: 1, 30>}, {pipeline_mode = #tpu.pipeline_mode<synchronous>, transform_indices = @transform_3, window_bounds = array<i64: 30, 50>}, {pipeline_mode = #tpu.pipeline_mode<synchronous>, transform_indices = @transform_4, window_bounds = array<i64: 1, 50>}, {pipeline_mode = #tpu.pipeline_mode<synchronous>, transform_indices = @transform_5, window_bounds = array<i64: 50, 200>}, {pipeline_mode = #tpu.pipeline_mode<synchronous>, transform_indices = @transform_6, window_bounds = array<i64: 1, 200>}, {pipeline_mode = #tpu.pipeline_mode<synchronous>, transform_indices = @transform_7, window_bounds = array<i64: 10, 40>}, {pipeline_mode = #tpu.pipeline_mode<synchronous>, transform_indices = @transform_8, window_bounds = array<i64: 10, 3>}, {pipeline_mode = #tpu.pipeline_mode<synchronous>, transform_indices = @transform_9, window_bounds = array<i64: 1, 3>}, {transform_indices = @transform_10, window_bounds = array<i64: 8, 3>}]} {
    %c0 = arith.constant 0 : index
    %c0_0 = arith.constant 0 : index
    %0 = vector.load %arg1[%c0, %c0_0] : memref<8x6xf32, #tpu.memory_space<vmem>>, vector<8x6xf32>
    %c0_1 = arith.constant 0 : index
    %c0_2 = arith.constant 0 : index
    %1 = vector.load %arg2[%c0_1, %c0_2] : memref<6x30xf32, #tpu.memory_space<vmem>>, vector<6x30xf32>
    %cst = arith.constant dense<0.000000e+00> : vector<8x30xf32>
    %2 = tpu.matmul %0, %1, %cst {dimension_numbers = #tpu.dot_dimension_numbers<[1], [0], [0], [1], [0, 0, 1, 1], [], []>} : vector<8x6xf32>, vector<6x30xf32>, vector<8x30xf32> -> vector<8x30xf32>
    %c0_3 = arith.constant 0 : index
    %c0_4 = arith.constant 0 : index
    %3 = vector.load %arg3[%c0_3, %c0_4] : memref<1x30xf32, #tpu.memory_space<vmem>>, vector<1x30xf32>
    %4 = vector.broadcast %3 : vector<1x30xf32> to vector<8x30xf32>
    %5 = arith.addf %2, %4 : vector<8x30xf32>
    %cst_5 = arith.constant 0.000000e+00 : f32
    %6 = vector.broadcast %cst_5 : f32 to vector<8x30xf32>
    %7 = arith.maximumf %5, %6 : vector<8x30xf32>
    %c0_6 = arith.constant 0 : index
    %c0_7 = arith.constant 0 : index
    %8 = vector.load %arg4[%c0_6, %c0_7] : memref<30x50xf32, #tpu.memory_space<vmem>>, vector<30x50xf32>
    %cst_8 = arith.constant dense<0.000000e+00> : vector<8x50xf32>
    %9 = tpu.matmul %7, %8, %cst_8 {dimension_numbers = #tpu.dot_dimension_numbers<[1], [0], [0], [1], [0, 0, 1, 1], [], []>} : vector<8x30xf32>, vector<30x50xf32>, vector<8x50xf32> -> vector<8x50xf32>
    %c0_9 = arith.constant 0 : index
    %c0_10 = arith.constant 0 : index
    %10 = vector.load %arg5[%c0_9, %c0_10] : memref<1x50xf32, #tpu.memory_space<vmem>>, vector<1x50xf32>
    %11 = vector.broadcast %10 : vector<1x50xf32> to vector<8x50xf32>
    %12 = arith.addf %9, %11 : vector<8x50xf32>
    %cst_11 = arith.constant 0.000000e+00 : f32
    %13 = vector.broadcast %cst_11 : f32 to vector<8x50xf32>
    %14 = arith.maximumf %12, %13 : vector<8x50xf32>
    %c0_12 = arith.constant 0 : index
    %c0_13 = arith.constant 0 : index
    %15 = vector.load %arg6[%c0_12, %c0_13] : memref<50x200xf32, #tpu.memory_space<vmem>>, vector<50x200xf32>
    %cst_14 = arith.constant dense<0.000000e+00> : vector<8x200xf32>
    %16 = tpu.matmul %14, %15, %cst_14 {dimension_numbers = #tpu.dot_dimension_numbers<[1], [0], [0], [1], [0, 0, 1, 1], [], []>} : vector<8x50xf32>, vector<50x200xf32>, vector<8x200xf32> -> vector<8x200xf32>
    %c0_15 = arith.constant 0 : index
    %c0_16 = arith.constant 0 : index
    %17 = vector.load %arg7[%c0_15, %c0_16] : memref<1x200xf32, #tpu.memory_space<vmem>>, vector<1x200xf32>
    %18 = vector.broadcast %17 : vector<1x200xf32> to vector<8x200xf32>
    %19 = arith.addf %16, %18 : vector<8x200xf32>
    %c0_17 = arith.constant 0 : index
    %c0_18 = arith.constant 0 : index
    %20 = vector.load %arg8[%c0_17, %c0_18] : memref<10x40xf32, #tpu.memory_space<vmem>>, vector<10x40xf32>
    %cst_19 = arith.constant 0.000000e+00 : f32
    %21 = vector.broadcast %cst_19 : f32 to vector<8x10xf32>
    %cst_20 = arith.constant 0.000000e+00 : f32
    %22 = vector.broadcast %cst_20 : f32 to vector<8x10xf32>
    %23 = vector.extract_strided_slice %19 {offsets = [0, 0], sizes = [8, 40], strides = [1, 1]} : vector<8x200xf32> to vector<8x40xf32>
    %cst_21 = arith.constant dense<0.000000e+00> : vector<8x40xf32>
    %24 = tpu.matmul %21, %20, %cst_21 {dimension_numbers = #tpu.dot_dimension_numbers<[1], [0], [0], [1], [0, 0, 1, 1], [], []>} : vector<8x10xf32>, vector<10x40xf32>, vector<8x40xf32> -> vector<8x40xf32>
    %25 = arith.addf %23, %24 : vector<8x40xf32>
    %26 = arith.negf %25 : vector<8x40xf32>
    %27 = math.exp %26 : vector<8x40xf32>
    %cst_22 = arith.constant 1.000000e+00 : f32
    %28 = vector.broadcast %cst_22 : f32 to vector<8x40xf32>
    %29 = arith.addf %28, %27 : vector<8x40xf32>
    %30 = arith.divf %28, %29 : vector<8x40xf32>
    %31 = vector.extract_strided_slice %30 {offsets = [0, 0], sizes = [8, 10], strides = [1, 1]} : vector<8x40xf32> to vector<8x10xf32>
    %32 = vector.extract_strided_slice %30 {offsets = [0, 10], sizes = [8, 10], strides = [1, 1]} : vector<8x40xf32> to vector<8x10xf32>
    %33 = vector.extract_strided_slice %30 {offsets = [0, 30], sizes = [8, 10], strides = [1, 1]} : vector<8x40xf32> to vector<8x10xf32>
    %34 = vector.extract_strided_slice %25 {offsets = [0, 20], sizes = [8, 10], strides = [1, 1]} : vector<8x40xf32> to vector<8x10xf32>
    %35 = math.tanh %34 : vector<8x10xf32>
    %36 = arith.mulf %32, %22 : vector<8x10xf32>
    %37 = arith.mulf %31, %35 : vector<8x10xf32>
    %38 = arith.addf %36, %37 : vector<8x10xf32>
    %39 = math.tanh %38 : vector<8x10xf32>
    %40 = arith.mulf %33, %39 : vector<8x10xf32>
    %41 = vector.extract_strided_slice %19 {offsets = [0, 40], sizes = [8, 40], strides = [1, 1]} : vector<8x200xf32> to vector<8x40xf32>
    %cst_23 = arith.constant dense<0.000000e+00> : vector<8x40xf32>
    %42 = tpu.matmul %40, %20, %cst_23 {dimension_numbers = #tpu.dot_dimension_numbers<[1], [0], [0], [1], [0, 0, 1, 1], [], []>} : vector<8x10xf32>, vector<10x40xf32>, vector<8x40xf32> -> vector<8x40xf32>
    %43 = arith.addf %41, %42 : vector<8x40xf32>
    %44 = arith.negf %43 : vector<8x40xf32>
    %45 = math.exp %44 : vector<8x40xf32>
    %cst_24 = arith.constant 1.000000e+00 : f32
    %46 = vector.broadcast %cst_24 : f32 to vector<8x40xf32>
    %47 = arith.addf %46, %45 : vector<8x40xf32>
    %48 = arith.divf %46, %47 : vector<8x40xf32>
    %49 = vector.extract_strided_slice %48 {offsets = [0, 0], sizes = [8, 10], strides = [1, 1]} : vector<8x40xf32> to vector<8x10xf32>
    %50 = vector.extract_strided_slice %48 {offsets = [0, 10], sizes = [8, 10], strides = [1, 1]} : vector<8x40xf32> to vector<8x10xf32>
    %51 = vector.extract_strided_slice %48 {offsets = [0, 30], sizes = [8, 10], strides = [1, 1]} : vector<8x40xf32> to vector<8x10xf32>
    %52 = vector.extract_strided_slice %43 {offsets = [0, 20], sizes = [8, 10], strides = [1, 1]} : vector<8x40xf32> to vector<8x10xf32>
    %53 = math.tanh %52 : vector<8x10xf32>
    %54 = arith.mulf %50, %38 : vector<8x10xf32>
    %55 = arith.mulf %49, %53 : vector<8x10xf32>
    %56 = arith.addf %54, %55 : vector<8x10xf32>
    %57 = math.tanh %56 : vector<8x10xf32>
    %58 = arith.mulf %51, %57 : vector<8x10xf32>
    %59 = vector.extract_strided_slice %19 {offsets = [0, 80], sizes = [8, 40], strides = [1, 1]} : vector<8x200xf32> to vector<8x40xf32>
    %cst_25 = arith.constant dense<0.000000e+00> : vector<8x40xf32>
    %60 = tpu.matmul %58, %20, %cst_25 {dimension_numbers = #tpu.dot_dimension_numbers<[1], [0], [0], [1], [0, 0, 1, 1], [], []>} : vector<8x10xf32>, vector<10x40xf32>, vector<8x40xf32> -> vector<8x40xf32>
    %61 = arith.addf %59, %60 : vector<8x40xf32>
    %62 = arith.negf %61 : vector<8x40xf32>
    %63 = math.exp %62 : vector<8x40xf32>
    %cst_26 = arith.constant 1.000000e+00 : f32
    %64 = vector.broadcast %cst_26 : f32 to vector<8x40xf32>
    %65 = arith.addf %64, %63 : vector<8x40xf32>
    %66 = arith.divf %64, %65 : vector<8x40xf32>
    %67 = vector.extract_strided_slice %66 {offsets = [0, 0], sizes = [8, 10], strides = [1, 1]} : vector<8x40xf32> to vector<8x10xf32>
    %68 = vector.extract_strided_slice %66 {offsets = [0, 10], sizes = [8, 10], strides = [1, 1]} : vector<8x40xf32> to vector<8x10xf32>
    %69 = vector.extract_strided_slice %66 {offsets = [0, 30], sizes = [8, 10], strides = [1, 1]} : vector<8x40xf32> to vector<8x10xf32>
    %70 = vector.extract_strided_slice %61 {offsets = [0, 20], sizes = [8, 10], strides = [1, 1]} : vector<8x40xf32> to vector<8x10xf32>
    %71 = math.tanh %70 : vector<8x10xf32>
    %72 = arith.mulf %68, %56 : vector<8x10xf32>
    %73 = arith.mulf %67, %71 : vector<8x10xf32>
    %74 = arith.addf %72, %73 : vector<8x10xf32>
    %75 = math.tanh %74 : vector<8x10xf32>
    %76 = arith.mulf %69, %75 : vector<8x10xf32>
    %77 = vector.extract_strided_slice %19 {offsets = [0, 120], sizes = [8, 40], strides = [1, 1]} : vector<8x200xf32> to vector<8x40xf32>
    %cst_27 = arith.constant dense<0.000000e+00> : vector<8x40xf32>
    %78 = tpu.matmul %76, %20, %cst_27 {dimension_numbers = #tpu.dot_dimension_numbers<[1], [0], [0], [1], [0, 0, 1, 1], [], []>} : vector<8x10xf32>, vector<10x40xf32>, vector<8x40xf32> -> vector<8x40xf32>
    %79 = arith.addf %77, %78 : vector<8x40xf32>
    %80 = arith.negf %79 : vector<8x40xf32>
    %81 = math.exp %80 : vector<8x40xf32>
    %cst_28 = arith.constant 1.000000e+00 : f32
    %82 = vector.broadcast %cst_28 : f32 to vector<8x40xf32>
    %83 = arith.addf %82, %81 : vector<8x40xf32>
    %84 = arith.divf %82, %83 : vector<8x40xf32>
    %85 = vector.extract_strided_slice %84 {offsets = [0, 0], sizes = [8, 10], strides = [1, 1]} : vector<8x40xf32> to vector<8x10xf32>
    %86 = vector.extract_strided_slice %84 {offsets = [0, 10], sizes = [8, 10], strides = [1, 1]} : vector<8x40xf32> to vector<8x10xf32>
    %87 = vector.extract_strided_slice %84 {offsets = [0, 30], sizes = [8, 10], strides = [1, 1]} : vector<8x40xf32> to vector<8x10xf32>
    %88 = vector.extract_strided_slice %79 {offsets = [0, 20], sizes = [8, 10], strides = [1, 1]} : vector<8x40xf32> to vector<8x10xf32>
    %89 = math.tanh %88 : vector<8x10xf32>
    %90 = arith.mulf %86, %74 : vector<8x10xf32>
    %91 = arith.mulf %85, %89 : vector<8x10xf32>
    %92 = arith.addf %90, %91 : vector<8x10xf32>
    %93 = math.tanh %92 : vector<8x10xf32>
    %94 = arith.mulf %87, %93 : vector<8x10xf32>
    %95 = vector.extract_strided_slice %19 {offsets = [0, 160], sizes = [8, 40], strides = [1, 1]} : vector<8x200xf32> to vector<8x40xf32>
    %cst_29 = arith.constant dense<0.000000e+00> : vector<8x40xf32>
    %96 = tpu.matmul %94, %20, %cst_29 {dimension_numbers = #tpu.dot_dimension_numbers<[1], [0], [0], [1], [0, 0, 1, 1], [], []>} : vector<8x10xf32>, vector<10x40xf32>, vector<8x40xf32> -> vector<8x40xf32>
    %97 = arith.addf %95, %96 : vector<8x40xf32>
    %98 = arith.negf %97 : vector<8x40xf32>
    %99 = math.exp %98 : vector<8x40xf32>
    %cst_30 = arith.constant 1.000000e+00 : f32
    %100 = vector.broadcast %cst_30 : f32 to vector<8x40xf32>
    %101 = arith.addf %100, %99 : vector<8x40xf32>
    %102 = arith.divf %100, %101 : vector<8x40xf32>
    %103 = vector.extract_strided_slice %102 {offsets = [0, 0], sizes = [8, 10], strides = [1, 1]} : vector<8x40xf32> to vector<8x10xf32>
    %104 = vector.extract_strided_slice %102 {offsets = [0, 10], sizes = [8, 10], strides = [1, 1]} : vector<8x40xf32> to vector<8x10xf32>
    %105 = vector.extract_strided_slice %102 {offsets = [0, 30], sizes = [8, 10], strides = [1, 1]} : vector<8x40xf32> to vector<8x10xf32>
    %106 = vector.extract_strided_slice %97 {offsets = [0, 20], sizes = [8, 10], strides = [1, 1]} : vector<8x40xf32> to vector<8x10xf32>
    %107 = math.tanh %106 : vector<8x10xf32>
    %108 = arith.mulf %104, %92 : vector<8x10xf32>
    %109 = arith.mulf %103, %107 : vector<8x10xf32>
    %110 = arith.addf %108, %109 : vector<8x10xf32>
    %111 = math.tanh %110 : vector<8x10xf32>
    %112 = arith.mulf %105, %111 : vector<8x10xf32>
    %c0_31 = arith.constant 0 : index
    %c0_32 = arith.constant 0 : index
    %113 = vector.load %arg9[%c0_31, %c0_32] : memref<10x3xf32, #tpu.memory_space<vmem>>, vector<10x3xf32>
    %cst_33 = arith.constant dense<0.000000e+00> : vector<8x3xf32>
    %114 = tpu.matmul %112, %113, %cst_33 {dimension_numbers = #tpu.dot_dimension_numbers<[1], [0], [0], [1], [0, 0, 1, 1], [], []>} : vector<8x10xf32>, vector<10x3xf32>, vector<8x3xf32> -> vector<8x3xf32>
    %c0_34 = arith.constant 0 : index
    %c0_35 = arith.constant 0 : index
    %115 = vector.load %arg10[%c0_34, %c0_35] : memref<1x3xf32, #tpu.memory_space<vmem>>, vector<1x3xf32>
    %116 = vector.broadcast %115 : vector<1x3xf32> to vector<8x3xf32>
    %117 = arith.addf %114, %116 : vector<8x3xf32>
    %cst_36 = arith.constant dense<0xFF800000> : vector<8xf32>
    %118 = vector.multi_reduction <maximumf>, %117, %cst_36 [1] : vector<8x3xf32> to vector<8xf32>
    %119 = vector.shape_cast %118 : vector<8xf32> to vector<8x1xf32>
    %120 = vector.broadcast %119 : vector<8x1xf32> to vector<8x3xf32>
    %121 = arith.subf %117, %120 : vector<8x3xf32>
    %122 = math.exp %121 : vector<8x3xf32>
    %cst_37 = arith.constant dense<0.000000e+00> : vector<8xf32>
    %123 = vector.multi_reduction <add>, %122, %cst_37 [1] : vector<8x3xf32> to vector<8xf32>
    %124 = vector.shape_cast %123 : vector<8xf32> to vector<8x1xf32>
    %125 = tpu.reciprocal %124 : vector<8x1xf32> -> vector<8x1xf32>
    %126 = vector.broadcast %125 : vector<8x1xf32> to vector<8x3xf32>
    %127 = arith.mulf %122, %126 : vector<8x3xf32>
    %c0_38 = arith.constant 0 : index
    %c0_39 = arith.constant 0 : index
    %128 = vector.load %arg11[%c0_38, %c0_39] : memref<8x3xf32, #tpu.memory_space<vmem>>, vector<8x3xf32>
    tpu.vector_store %arg11[%c0_38, %c0_39], %127 {strides = array<i32>} : memref<8x3xf32, #tpu.memory_space<vmem>>, vector<8x3xf32>,
    return
  }
  func.func @transform_0(%arg0: i32) -> (i32, i32) {
    %c0_i32 = arith.constant 0 : i32
    %c0_i32_0 = arith.constant 0 : i32
    return %arg0, %c0_i32 : i32, i32
  }
  func.func @transform_1(%arg0: i32) -> (i32, i32) {
    %c0_i32 = arith.constant 0 : i32
    %c0_i32_0 = arith.constant 0 : i32
    %c0_i32_1 = arith.constant 0 : i32
    return %c0_i32, %c0_i32_0 : i32, i32
  }
  func.func @transform_2(%arg0: i32) -> (i32, i32) {
    %c0_i32 = arith.constant 0 : i32
    %c0_i32_0 = arith.constant 0 : i32
    %c0_i32_1 = arith.constant 0 : i32
    return %c0_i32, %c0_i32_0 : i32, i32
  }
  func.func @transform_3(%arg0: i32) -> (i32, i32) {
    %c0_i32 = arith.constant 0 : i32
    %c0_i32_0 = arith.constant 0 : i32
    %c0_i32_1 = arith.constant 0 : i32
    return %c0_i32, %c0_i32_0 : i32, i32
  }
  func.func @transform_4(%arg0: i32) -> (i32, i32) {
    %c0_i32 = arith.constant 0 : i32
    %c0_i32_0 = arith.constant 0 : i32
    %c0_i32_1 = arith.constant 0 : i32
    return %c0_i32, %c0_i32_0 : i32, i32
  }
  func.func @transform_5(%arg0: i32) -> (i32, i32) {
    %c0_i32 = arith.constant 0 : i32
    %c0_i32_0 = arith.constant 0 : i32
    %c0_i32_1 = arith.constant 0 : i32
    return %c0_i32, %c0_i32_0 : i32, i32
  }
  func.func @transform_6(%arg0: i32) -> (i32, i32) {
    %c0_i32 = arith.constant 0 : i32
    %c0_i32_0 = arith.constant 0 : i32
    %c0_i32_1 = arith.constant 0 : i32
    return %c0_i32, %c0_i32_0 : i32, i32
  }
  func.func @transform_7(%arg0: i32) -> (i32, i32) {
    %c0_i32 = arith.constant 0 : i32
    %c0_i32_0 = arith.constant 0 : i32
    %c0_i32_1 = arith.constant 0 : i32
    return %c0_i32, %c0_i32_0 : i32, i32
  }
  func.func @transform_8(%arg0: i32) -> (i32, i32) {
    %c0_i32 = arith.constant 0 : i32
    %c0_i32_0 = arith.constant 0 : i32
    %c0_i32_1 = arith.constant 0 : i32
    return %c0_i32, %c0_i32_0 : i32, i32
  }
  func.func @transform_9(%arg0: i32) -> (i32, i32) {
    %c0_i32 = arith.constant 0 : i32
    %c0_i32_0 = arith.constant 0 : i32
    %c0_i32_1 = arith.constant 0 : i32
    return %c0_i32, %c0_i32_0 : i32, i32
  }
  func.func @transform_10(%arg0: i32) -> (i32, i32) {
    %c0_i32 = arith.constant 0 : i32
    %c0_i32_0 = arith.constant 0 : i32
    return %arg0, %c0_i32 : i32, i32
  }
}

</mosaic_0001>

<llo_original>
// kernel: tpu_custom_call.1
$region0: #{tpu_custom_call.1}
  #allocation0 [shape = 'u32[]', space=smem, size = 0x4, offset = 0x4, fixed_abs, tag = 'smem constant byte address 0x4 - core index']
  #allocation1 [shape = 'u32[144,128]{1,0:T(1,128)}', space=vmem, size = 0x12000, scoped, tag = 'internal scratch']
  %s0 = inlined_call_operand.vmem [shape: f32[8,6], index: 0, kind: input, shape index: {}]
  %s1 = inlined_call_operand.hbm [shape: f32[6,30], index: 1, kind: input, shape index: {}]
  %s2 = inlined_call_operand.vmem [shape: f32[1,30], index: 2, kind: input, shape index: {}]
  %s3 = inlined_call_operand.hbm [shape: f32[30,50], index: 3, kind: input, shape index: {}]
  %s4 = inlined_call_operand.vmem [shape: f32[1,50], index: 4, kind: input, shape index: {}]
  %s5 = inlined_call_operand.hbm [shape: f32[50,200], index: 5, kind: input, shape index: {}]
  %s6 = inlined_call_operand.vmem [shape: f32[1,200], index: 6, kind: input, shape index: {}]
  %s7 = inlined_call_operand.vmem [shape: f32[10,40], index: 7, kind: input, shape index: {}]
  %s8 = inlined_call_operand.vmem [shape: f32[10,3], index: 8, kind: input, shape index: {}]
  %s9 = inlined_call_operand.vmem [shape: f32[1,3], index: 9, kind: input, shape index: {}]
  %s10 = inlined_call_operand.vmem [shape: f32[8,3], index: 10, kind: output, shape index: {}]
  %s11 = sld [smem:[#allocation0]]
  $region62: #{tpu_custom_call.1} parent=0
    _
  %s13 = ssub.s32 1, %s11
  %s14 = scalar_select 0, %s13, %s11
  $region1: #{tpu_custom_call.1} parent=0
    #allocation2 [shape = 'u8[4096]{0}', space=vmem, size = 0x1000, scoped, tag = 'input window, operand 1, single buffered']
    #allocation3 [shape = 's32[1]{0}', space=sflag, size = 0x4, scoped, tag = 'scoped memory for tpu_custom_call.1']
    #allocation4 [shape = 'u8[16384]{0}', space=vmem, size = 0x4000, scoped, tag = 'input window, operand 3, single buffered']
    #allocation5 [shape = 's32[1]{0}', space=sflag, size = 0x4, scoped, tag = 'scoped memory for tpu_custom_call.1']
    #allocation6 [shape = 'u8[57344]{0}', space=vmem, size = 0xe000, scoped, tag = 'input window, operand 5, single buffered']
    %15 = vsyncpa [#allocation3], 0
    %16 = vsyncpa [#allocation5], 0
    // Predicated region
    $region2: #{tpu_custom_call.1} parent=1 // pred_check
      _
    $region3: #{tpu_custom_call.1} parent=1 // pred_check_branch
      %18 = sbr.rel (0) target = $region5
    $region4: #{tpu_custom_call.1} parent=1 // pred_region
      _
    $region5: #{tpu_custom_call.1} parent=1 // pred_fallthru
      _
    // Predicated region
    $region6: #{tpu_custom_call.1} parent=1 // pred_check
      _
    $region7: #{tpu_custom_call.1} parent=1 // pred_check_branch
      %20 = sbr.rel (0) target = $region9
    $region8: #{tpu_custom_call.1} parent=1 // pred_region
      %s22 = ssub.s32 128, 128
      %23 = vsyncadd [#allocation3], %s22
      %s25 = sshll.u32 [#allocation2], 4
      %s26 = int_to_ptr.vmem [resolvable:$true] %s25
      %28 = dma.hbm_to_vmem [thread:$0]  %s1, 128, %s26, [#allocation3]
    $region9: #{tpu_custom_call.1} parent=1 // pred_fallthru
      _
    // Predicated region
    $region10: #{tpu_custom_call.1} parent=1 // pred_check
      _
    $region11: #{tpu_custom_call.1} parent=1 // pred_check_branch
      %30 = sbr.rel (0) target = $region13
    $region12: #{tpu_custom_call.1} parent=1 // pred_region
      _
    $region13: #{tpu_custom_call.1} parent=1 // pred_fallthru
      _
    // Predicated region
    $region14: #{tpu_custom_call.1} parent=1 // pred_check
      _
    $region15: #{tpu_custom_call.1} parent=1 // pred_check_branch
      %32 = sbr.rel (0) target = $region17
    $region16: #{tpu_custom_call.1} parent=1 // pred_region
      %s34 = ssub.s32 512, 512
      %35 = vsyncadd [#allocation5], %s34
      %s36 = sshll.u32 [#allocation4], 4
      %s37 = int_to_ptr.vmem [resolvable:$true] %s36
      %42 = dma.hbm_to_vmem [thread:$0]  %s3, 512, %s37, [#allocation5], 128, 128, 8
    $region17: #{tpu_custom_call.1} parent=1 // pred_fallthru
      _
    // Predicated region
    $region18: #{tpu_custom_call.1} parent=1 // pred_check
      _
    $region19: #{tpu_custom_call.1} parent=1 // pred_check_branch
      %44 = sbr.rel (0) target = $region21
    $region20: #{tpu_custom_call.1} parent=1 // pred_region
      _
    $region21: #{tpu_custom_call.1} parent=1 // pred_fallthru
      _
    // Predicated region
    $region22: #{tpu_custom_call.1} parent=1 // pred_check
      _
    $region23: #{tpu_custom_call.1} parent=1 // pred_check_branch
      %46 = sbr.rel (0) target = $region25
    $region24: #{tpu_custom_call.1} parent=1 // pred_region
      %s48 = ssub.s32 1792, 1792
      %49 = vsyncadd [#allocation5], %s48
      %s50 = sshll.u32 [#allocation6], 4
      %s51 = int_to_ptr.vmem [resolvable:$true] %s50
      %56 = dma.hbm_to_vmem [thread:$0]  %s5, 1792, %s51, [#allocation5], 256, 256, 16
    $region25: #{tpu_custom_call.1} parent=1 // pred_fallthru
      _
    // Predicated region
    $region26: #{tpu_custom_call.1} parent=1 // pred_check
      _
    $region27: #{tpu_custom_call.1} parent=1 // pred_check_branch
      %58 = sbr.rel (0) target = $region29
    $region28: #{tpu_custom_call.1} parent=1 // pred_region
      _
    $region29: #{tpu_custom_call.1} parent=1 // pred_fallthru
      _
    // Predicated region
    $region30: #{tpu_custom_call.1} parent=1 // pred_check
      _
    $region31: #{tpu_custom_call.1} parent=1 // pred_check_branch
      %60 = sbr.rel (0) target = $region33
    $region32: #{tpu_custom_call.1} parent=1 // pred_region
      _
    $region33: #{tpu_custom_call.1} parent=1 // pred_fallthru
      _
    // Predicated region
    $region34: #{tpu_custom_call.1} parent=1 // pred_check
      _
    $region35: #{tpu_custom_call.1} parent=1 // pred_check_branch
      %62 = sbr.rel (0) target = $region37
    $region36: #{tpu_custom_call.1} parent=1 // pred_region
      _
    $region37: #{tpu_custom_call.1} parent=1 // pred_fallthru
      _
    // Predicated region
    $region38: #{tpu_custom_call.1} parent=1 // pred_check
      _
    $region39: #{tpu_custom_call.1} parent=1 // pred_check_branch
      %64 = sbr.rel (0) target = $region41
    $region40: #{tpu_custom_call.1} parent=1 // pred_region
      _
    $region41: #{tpu_custom_call.1} parent=1 // pred_fallthru
      _
    // Predicated region
    $region42: #{tpu_custom_call.1} parent=1 // pred_check
      _
    $region43: #{tpu_custom_call.1} parent=1 // pred_check_branch
      %66 = sbr.rel (0) target = $region45
    $region44: #{tpu_custom_call.1} parent=1 // pred_region
      %67 = dma.done [#allocation3], 128
    $region45: #{tpu_custom_call.1} parent=1 // pred_fallthru
      _
    // Predicated region
    $region46: #{tpu_custom_call.1} parent=1 // pred_check
      _
    $region47: #{tpu_custom_call.1} parent=1 // pred_check_branch
      %69 = sbr.rel (0) target = $region49
    $region48: #{tpu_custom_call.1} parent=1 // pred_region
      %70 = dma.done [#allocation5], 512
    $region49: #{tpu_custom_call.1} parent=1 // pred_fallthru
      _
    // Predicated region
    $region50: #{tpu_custom_call.1} parent=1 // pred_check
      _
    $region51: #{tpu_custom_call.1} parent=1 // pred_check_branch
      %72 = sbr.rel (0) target = $region53
    $region52: #{tpu_custom_call.1} parent=1 // pred_region
      %73 = dma.done [#allocation5], 1792
    $region53: #{tpu_custom_call.1} parent=1 // pred_fallthru
      _
    %v74 = vld [vmem:[%s0] sm:$0xff]
    %v75 = vld [vmem:[#allocation2] sm:$0x3f]
    %v76 = vld [vmem:[%s2] sm:$0x1]
    %v78 = vlaneseq
    %v79 = vshrl.u32 %v78, 7
    %v80 = vsub.s32 0, %v79
    %v81 = vrot.slane %v76, %v80
    %vm83 = vcmask 48128
    %v85 = vsel %vm83, %v74, 0
    %vm87 = vcmask 1045504
    %v89 = vsel %vm87, %v75, 0
    %91 = vmatprep.subr.mxu0 0.0
    %92 = vmatpush1.msra.mxu0 %v89
    %93 = vmatprep.subr.mxu0 0.0
    %94 = vmatpush1.msra.mxu0 0.0
    %95 = vmatprep.subr.mxu0 0.0
    %96 = vmatpush1.msra.mxu0 0.0
    %97 = vmatprep.subr.mxu0 0.0
    %98 = vmatpush1.msra.mxu0 0.0
    %99 = vmatprep.subr.mxu0 0.0
    %100 = vmatpush1.msra.mxu0 0.0
    %101 = vmatprep.subr.mxu0 0.0
    %102 = vmatpush1.msra.mxu0 0.0
    %103 = vmatprep.subr.mxu0 0.0
    %104 = vmatpush1.msra.mxu0 0.0
    %105 = vmatprep.subr.mxu0 0.0
    %106 = vmatpush1.msra.mxu0 0.0
    %107 = vmatprep.subr.mxu0 0.0
    %108 = vmatpush1.msra.mxu0 0.0
    %109 = vmatprep.subr.mxu0 0.0
    %110 = vmatpush1.msra.mxu0 0.0
    %111 = vmatprep.subr.mxu0 0.0
    %112 = vmatpush1.msra.mxu0 0.0
    %113 = vmatprep.subr.mxu0 0.0
    %114 = vmatpush1.msra.mxu0 0.0
    %115 = vmatprep.subr.mxu0 0.0
    %116 = vmatpush1.msra.mxu0 0.0
    %117 = vmatprep.subr.mxu0 0.0
    %118 = vmatpush1.msra.mxu0 0.0
    %119 = vmatprep.subr.mxu0 0.0
    %120 = vmatpush1.msra.mxu0 0.0
    %121 = vmatprep.subr.mxu0 0.0
    %122 = vmatpush1.msra.mxu0 0.0
    %123 = vmatprep.subr.mxu0 0.0
    %124 = vmatpush1.msra.mxu0 0.0
    %125 = vmatprep.subr.mxu0 0.0
    %126 = vmatpush1.msra.mxu0 0.0
    %127 = vmatprep.subr.mxu0 0.0
    %128 = vmatpush1.msra.mxu0 0.0
    %129 = vmatprep.subr.mxu0 0.0
    %130 = vmatpush1.msra.mxu0 0.0
    %131 = vmatprep.subr.mxu0 0.0
    %132 = vmatpush1.msra.mxu0 0.0
    %133 = vmatprep.subr.mxu0 0.0
    %134 = vmatpush1.msra.mxu0 0.0
    %135 = vmatprep.subr.mxu0 0.0
    %136 = vmatpush1.msra.mxu0 0.0
    %137 = vmatprep.subr.mxu0 0.0
    %138 = vmatpush1.msra.mxu0 0.0
    %139 = vmatprep.subr.mxu0 0.0
    %140 = vmatpush1.msra.mxu0 0.0
    %141 = vmatprep.subr.mxu0 0.0
    %142 = vmatpush1.msra.mxu0 0.0
    %143 = vmatprep.subr.mxu0 0.0
    %144 = vmatpush1.msra.mxu0 0.0
    %145 = vmatprep.subr.mxu0 0.0
    %146 = vmatpush1.msra.mxu0 0.0
    %147 = vmatprep.subr.mxu0 0.0
    %148 = vmatpush1.msra.mxu0 0.0
    %149 = vmatprep.subr.mxu0 0.0
    %150 = vmatpush1.msra.mxu0 0.0
    %151 = vmatprep.subr.mxu0 0.0
    %152 = vmatpush1.msra.mxu0 0.0
    %153 = vmatprep.subr.mxu0 0.0
    %154 = vmatpush1.msra.mxu0 0.0
    %155 = vmatprep.mubr.f32.mxu0 0.0
    %156 = vmatmul.mubr.f32.gmra.mrb[0].mxu0 %v85
    %v157 = vpop.f32.mrb[0].mxu0
    %v158 = vadd.f32 %v81, %v157
    %v159 = vpop.f32.mrb[0].mxu0
    %160 = vdwg.mxu0
    %v161 = vmax.f32 %v158, 0.0
    %v162 = vld [vmem:[#allocation4] sm:$0xff]
    %v163 = vld [vmem:[#allocation4 + $0x8] sm:$0xff]
    %v164 = vld [vmem:[#allocation4 + $0x10] sm:$0xff]
    %v165 = vld [vmem:[#allocation4 + $0x18] sm:$0x3f]
    %v166 = vld [vmem:[%s4] sm:$0x1]
    %v168 = vlaneseq
    %v169 = vshrl.u32 %v168, 7
    %v170 = vsub.s32 0, %v169
    %v171 = vrot.slane %v166, %v170
    %vm173 = vcmask 244736
    %v175 = vsel %vm173, %v161, 0
    %v178 = vsel %vm87, %v165, 0
    %180 = vmatprep.subr.mxu0 0.0
    %181 = vmatpush1.msra.mxu0 %v162
    %182 = vmatprep.subr.mxu0 0.0
    %183 = vmatpush1.msra.mxu0 %v163
    %184 = vmatprep.subr.mxu0 0.0
    %185 = vmatpush1.msra.mxu0 %v164
    %186 = vmatprep.subr.mxu0 0.0
    %187 = vmatpush1.msra.mxu0 %v178
    %188 = vmatprep.subr.mxu0 0.0
    %189 = vmatpush1.msra.mxu0 0.0
    %190 = vmatprep.subr.mxu0 0.0
    %191 = vmatpush1.msra.mxu0 0.0
    %192 = vmatprep.subr.mxu0 0.0
    %193 = vmatpush1.msra.mxu0 0.0
    %194 = vmatprep.subr.mxu0 0.0
    %195 = vmatpush1.msra.mxu0 0.0
    %196 = vmatprep.subr.mxu0 0.0
    %197 = vmatpush1.msra.mxu0 0.0
    %198 = vmatprep.subr.mxu0 0.0
    %199 = vmatpush1.msra.mxu0 0.0
    %200 = vmatprep.subr.mxu0 0.0
    %201 = vmatpush1.msra.mxu0 0.0
    %202 = vmatprep.subr.mxu0 0.0
    %203 = vmatpush1.msra.mxu0 0.0
    %204 = vmatprep.subr.mxu0 0.0
    %205 = vmatpush1.msra.mxu0 0.0
    %206 = vmatprep.subr.mxu0 0.0
    %207 = vmatpush1.msra.mxu0 0.0
    %208 = vmatprep.subr.mxu0 0.0
    %209 = vmatpush1.msra.mxu0 0.0
    %210 = vmatprep.subr.mxu0 0.0
    %211 = vmatpush1.msra.mxu0 0.0
    %212 = vmatprep.subr.mxu0 0.0
    %213 = vmatpush1.msra.mxu0 0.0
    %214 = vmatprep.subr.mxu0 0.0
    %215 = vmatpush1.msra.mxu0 0.0
    %216 = vmatprep.subr.mxu0 0.0
    %217 = vmatpush1.msra.mxu0 0.0
    %218 = vmatprep.subr.mxu0 0.0
    %219 = vmatpush1.msra.mxu0 0.0
    %220 = vmatprep.subr.mxu0 0.0
    %221 = vmatpush1.msra.mxu0 0.0
    %222 = vmatprep.subr.mxu0 0.0
    %223 = vmatpush1.msra.mxu0 0.0
    %224 = vmatprep.subr.mxu0 0.0
    %225 = vmatpush1.msra.mxu0 0.0
    %226 = vmatprep.subr.mxu0 0.0
    %227 = vmatpush1.msra.mxu0 0.0
    %228 = vmatprep.subr.mxu0 0.0
    %229 = vmatpush1.msra.mxu0 0.0
    %230 = vmatprep.subr.mxu0 0.0
    %231 = vmatpush1.msra.mxu0 0.0
    %232 = vmatprep.subr.mxu0 0.0
    %233 = vmatpush1.msra.mxu0 0.0
    %234 = vmatprep.subr.mxu0 0.0
    %235 = vmatpush1.msra.mxu0 0.0
    %236 = vmatprep.subr.mxu0 0.0
    %237 = vmatpush1.msra.mxu0 0.0
    %238 = vmatprep.subr.mxu0 0.0
    %239 = vmatpush1.msra.mxu0 0.0
    %240 = vmatprep.subr.mxu0 0.0
    %241 = vmatpush1.msra.mxu0 0.0
    %242 = vmatprep.subr.mxu0 0.0
    %243 = vmatpush1.msra.mxu0 0.0
    %244 = vmatprep.mubr.f32.mxu0 0.0
    %245 = vmatmul.mubr.f32.gmra.mrb[0].mxu0 %v175
    %v246 = vpop.f32.mrb[0].mxu0
    %v247 = vadd.f32 %v171, %v246
    %v248 = vpop.f32.mrb[0].mxu0
    %249 = vdwg.mxu0
    %v250 = vmax.f32 %v247, 0.0
    %v251 = vld [vmem:[#allocation6] sm:$0xff]
    %v252 = vld [vmem:[#allocation6 + $0x8] sm:$0xff]
    %v253 = vld [vmem:[#allocation6 + $0x10] sm:$0xff]
    %v254 = vld [vmem:[#allocation6 + $0x18] sm:$0xff]
    %v255 = vld [vmem:[#allocation6 + $0x20] sm:$0xff]
    %v256 = vld [vmem:[#allocation6 + $0x28] sm:$0xff]
    %v257 = vld [vmem:[#allocation6 + $0x30] sm:$0xff]
    %v258 = vld [vmem:[#allocation6 + $0x38] sm:$0xff]
    %v259 = vld [vmem:[#allocation6 + $0x40] sm:$0xff]
    %v260 = vld [vmem:[#allocation6 + $0x48] sm:$0xff]
    %v261 = vld [vmem:[#allocation6 + $0x50] sm:$0xff]
    %v262 = vld [vmem:[#allocation6 + $0x58] sm:$0xff]
    %v263 = vld [vmem:[#allocation6 + $0x60] sm:$0x3]
    %v264 = vld [vmem:[#allocation6 + $0x68] sm:$0x3]
    %v265 = vld [vmem:[%s6] sm:$0x3]
    %v267 = vlaneseq
    %v268 = vshrl.u32 %v267, 7
    %v269 = vsub.s32 0, %v268
    %v270 = vrot.slane %v265, %v269
    %v271 = vlaneseq
    %v272 = vshrl.u32 %v271, 7
    %v273 = vsub.s32 1, %v272
    %v274 = vrot.slane %v265, %v273
    %vm277 = vcmask 408576
    %v279 = vsel %vm277, %v250, 0
    %vm281 = vcmask 1041408
    %v283 = vsel %vm281, %v263, 0
    %v286 = vsel %vm281, %v264, 0
    %288 = vmatprep.subr.mxu0 %v252
    %289 = vmatpush1.msra.mxu0 %v251
    %290 = vmatprep.subr.mxu0 %v254
    %291 = vmatpush1.msra.mxu0 %v253
    %292 = vmatprep.subr.mxu0 %v256
    %293 = vmatpush1.msra.mxu0 %v255
    %294 = vmatprep.subr.mxu0 %v258
    %295 = vmatpush1.msra.mxu0 %v257
    %296 = vmatprep.subr.mxu0 %v260
    %297 = vmatpush1.msra.mxu0 %v259
    %298 = vmatprep.subr.mxu0 %v262
    %299 = vmatpush1.msra.mxu0 %v261
    %300 = vmatprep.subr.mxu0 %v286
    %301 = vmatpush1.msra.mxu0 %v283
    %302 = vmatprep.subr.mxu0 0.0
    %303 = vmatpush1.msra.mxu0 0.0
    %304 = vmatprep.subr.mxu0 0.0
    %305 = vmatpush1.msra.mxu0 0.0
    %306 = vmatprep.subr.mxu0 0.0
    %307 = vmatpush1.msra.mxu0 0.0
    %308 = vmatprep.subr.mxu0 0.0
    %309 = vmatpush1.msra.mxu0 0.0
    %310 = vmatprep.subr.mxu0 0.0
    %311 = vmatpush1.msra.mxu0 0.0
    %312 = vmatprep.subr.mxu0 0.0
    %313 = vmatpush1.msra.mxu0 0.0
    %314 = vmatprep.subr.mxu0 0.0
    %315 = vmatpush1.msra.mxu0 0.0
    %316 = vmatprep.subr.mxu0 0.0
    %317 = vmatpush1.msra.mxu0 0.0
    %318 = vmatprep.subr.mxu0 0.0
    %319 = vmatpush1.msra.mxu0 0.0
    %320 = vmatprep.subr.mxu0 0.0
    %321 = vmatpush1.msra.mxu0 0.0
    %322 = vmatprep.subr.mxu0 0.0
    %323 = vmatpush1.msra.mxu0 0.0
    %324 = vmatprep.subr.mxu0 0.0
    %325 = vmatpush1.msra.mxu0 0.0
    %326 = vmatprep.subr.mxu0 0.0
    %327 = vmatpush1.msra.mxu0 0.0
    %328 = vmatprep.subr.mxu0 0.0
    %329 = vmatpush1.msra.mxu0 0.0
    %330 = vmatprep.subr.mxu0 0.0
    %331 = vmatpush1.msra.mxu0 0.0
    %332 = vmatprep.subr.mxu0 0.0
    %333 = vmatpush1.msra.mxu0 0.0
    %334 = vmatprep.subr.mxu0 0.0
    %335 = vmatpush1.msra.mxu0 0.0
    %336 = vmatprep.subr.mxu0 0.0
    %337 = vmatpush1.msra.mxu0 0.0
    %338 = vmatprep.subr.mxu0 0.0
    %339 = vmatpush1.msra.mxu0 0.0
    %340 = vmatprep.subr.mxu0 0.0
    %341 = vmatpush1.msra.mxu0 0.0
    %342 = vmatprep.subr.mxu0 0.0
    %343 = vmatpush1.msra.mxu0 0.0
    %344 = vmatprep.subr.mxu0 0.0
    %345 = vmatpush1.msra.mxu0 0.0
    %346 = vmatprep.subr.mxu0 0.0
    %347 = vmatpush1.msra.mxu0 0.0
    %348 = vmatprep.subr.mxu0 0.0
    %349 = vmatpush1.msra.mxu0 0.0
    %350 = vmatprep.subr.mxu0 0.0
    %351 = vmatpush1.msra.mxu0 0.0
    %352 = vmatprep.mubr.f32.mxu0 0.0
    %353 = vmatmul.mubr.f32.gmra.mrb[0].mxu0 %v279
    %v354 = vpop.f32.mrb[0].mxu0
    %v355 = vadd.f32 %v270, %v354
    %v356 = vpop.f32.mrb[0].mxu0
    %v357 = vadd.f32 %v274, %v356
    %358 = vdwg.mxu0
    %v359 = vld [vmem:[%s7] sm:$0xff]
    %v360 = vld [vmem:[%s7 + $0x8] sm:$0x3]
    %vm361 = vcmask 80896
    %v363 = vsel %vm361, 0.0, 0
    %v366 = vsel %vm281, %v360, 0
    %368 = vmatprep.subr.mxu0 0.0
    %369 = vmatpush1.msra.mxu0 %v359
    %370 = vmatprep.subr.mxu0 0.0
    %371 = vmatpush1.msra.mxu0 %v366
    %372 = vmatprep.subr.mxu0 0.0
    %373 = vmatpush1.msra.mxu0 0.0
    %374 = vmatprep.subr.mxu0 0.0
    %375 = vmatpush1.msra.mxu0 0.0
    %376 = vmatprep.subr.mxu0 0.0
    %377 = vmatpush1.msra.mxu0 0.0
    %378 = vmatprep.subr.mxu0 0.0
    %379 = vmatpush1.msra.mxu0 0.0
    %380 = vmatprep.subr.mxu0 0.0
    %381 = vmatpush1.msra.mxu0 0.0
    %382 = vmatprep.subr.mxu0 0.0
    %383 = vmatpush1.msra.mxu0 0.0
    %384 = vmatprep.subr.mxu0 0.0
    %385 = vmatpush1.msra.mxu0 0.0
    %386 = vmatprep.subr.mxu0 0.0
    %387 = vmatpush1.msra.mxu0 0.0
    %388 = vmatprep.subr.mxu0 0.0
    %389 = vmatpush1.msra.mxu0 0.0
    %390 = vmatprep.subr.mxu0 0.0
    %391 = vmatpush1.msra.mxu0 0.0
    %392 = vmatprep.subr.mxu0 0.0
    %393 = vmatpush1.msra.mxu0 0.0
    %394 = vmatprep.subr.mxu0 0.0
    %395 = vmatpush1.msra.mxu0 0.0
    %396 = vmatprep.subr.mxu0 0.0
    %397 = vmatpush1.msra.mxu0 0.0
    %398 = vmatprep.subr.mxu0 0.0
    %399 = vmatpush1.msra.mxu0 0.0
    %400 = vmatprep.subr.mxu0 0.0
    %401 = vmatpush1.msra.mxu0 0.0
    %402 = vmatprep.subr.mxu0 0.0
    %403 = vmatpush1.msra.mxu0 0.0
    %404 = vmatprep.subr.mxu0 0.0
    %405 = vmatpush1.msra.mxu0 0.0
    %406 = vmatprep.subr.mxu0 0.0
    %407 = vmatpush1.msra.mxu0 0.0
    %408 = vmatprep.subr.mxu0 0.0
    %409 = vmatpush1.msra.mxu0 0.0
    %410 = vmatprep.subr.mxu0 0.0
    %411 = vmatpush1.msra.mxu0 0.0
    %412 = vmatprep.subr.mxu0 0.0
    %413 = vmatpush1.msra.mxu0 0.0
    %414 = vmatprep.subr.mxu0 0.0
    %415 = vmatpush1.msra.mxu0 0.0
    %416 = vmatprep.subr.mxu0 0.0
    %417 = vmatpush1.msra.mxu0 0.0
    %418 = vmatprep.subr.mxu0 0.0
    %419 = vmatpush1.msra.mxu0 0.0
    %420 = vmatprep.subr.mxu0 0.0
    %421 = vmatpush1.msra.mxu0 0.0
    %422 = vmatprep.subr.mxu0 0.0
    %423 = vmatpush1.msra.mxu0 0.0
    %424 = vmatprep.subr.mxu0 0.0
    %425 = vmatpush1.msra.mxu0 0.0
    %426 = vmatprep.subr.mxu0 0.0
    %427 = vmatpush1.msra.mxu0 0.0
    %428 = vmatprep.subr.mxu0 0.0
    %429 = vmatpush1.msra.mxu0 0.0
    %430 = vmatprep.subr.mxu0 0.0
    %431 = vmatpush1.msra.mxu0 0.0
    %432 = vmatprep.mubr.f32.mxu0 0.0
    %433 = vmatmul.mubr.f32.gmra.mrb[0].mxu0 %v363
    %v434 = vpop.f32.mrb[0].mxu0
    %v435 = vadd.f32 0.0, %v434
    %v436 = vpop.f32.mrb[0].mxu0
    %437 = vdwg.mxu0
    %v438 = vadd.f32 %v355, %v435
    %v439 = vxor.u32 %v438, 2147483648
    %v440 = vmul.f32 %v439, 1.442695
    %v441 = vpow.pop %v440
    %v442 = vadd.f32 %v441, 1.0
    %v443 = vrcp.pop %v442
    %v444 = vmul.f32 1.0, %v443
    %v445 = vtanh.pop %v438
    %v446 = vmul.f32 %v444, 0.0
    %448 = vrot.lane.b32.xlu0 %v445, 108
    %v449 = vpop.permute.xlu0 %448
    %v451 = vmul.f32 %v444, %v449
    %453 = vrot.lane.b32.xlu0 %v451, 10
    %v454 = vpop.permute.xlu0 %453
    %v456 = vadd.f32 %v446, %v454
    %v457 = vtanh.pop %v456
    %459 = vrot.lane.b32.xlu0 %v457, 20
    %v460 = vpop.permute.xlu0 %459
    %v462 = vmul.f32 %v444, %v460
    %464 = vrot.lane.b32.xlu0 %v462, 98
    %v465 = vpop.permute.xlu0 %464
    %v466 = vsel %vm361, %v465, 0
    %468 = vmatprep.subr.mxu0 0.0
    %469 = vmatpush1.msra.mxu0 %v359
    %470 = vmatprep.subr.mxu0 0.0
    %471 = vmatpush1.msra.mxu0 %v366
    %472 = vmatprep.subr.mxu0 0.0
    %473 = vmatpush1.msra.mxu0 0.0
    %474 = vmatprep.subr.mxu0 0.0
    %475 = vmatpush1.msra.mxu0 0.0
    %476 = vmatprep.subr.mxu0 0.0
    %477 = vmatpush1.msra.mxu0 0.0
    %478 = vmatprep.subr.mxu0 0.0
    %479 = vmatpush1.msra.mxu0 0.0
    %480 = vmatprep.subr.mxu0 0.0
    %481 = vmatpush1.msra.mxu0 0.0
    %482 = vmatprep.subr.mxu0 0.0
    %483 = vmatpush1.msra.mxu0 0.0
    %484 = vmatprep.subr.mxu0 0.0
    %485 = vmatpush1.msra.mxu0 0.0
    %486 = vmatprep.subr.mxu0 0.0
    %487 = vmatpush1.msra.mxu0 0.0
    %488 = vmatprep.subr.mxu0 0.0
    %489 = vmatpush1.msra.mxu0 0.0
    %490 = vmatprep.subr.mxu0 0.0
    %491 = vmatpush1.msra.mxu0 0.0
    %492 = vmatprep.subr.mxu0 0.0
    %493 = vmatpush1.msra.mxu0 0.0
    %494 = vmatprep.subr.mxu0 0.0
    %495 = vmatpush1.msra.mxu0 0.0
    %496 = vmatprep.subr.mxu0 0.0
    %497 = vmatpush1.msra.mxu0 0.0
    %498 = vmatprep.subr.mxu0 0.0
    %499 = vmatpush1.msra.mxu0 0.0
    %500 = vmatprep.subr.mxu0 0.0
    %501 = vmatpush1.msra.mxu0 0.0
    %502 = vmatprep.subr.mxu0 0.0
    %503 = vmatpush1.msra.mxu0 0.0
    %504 = vmatprep.subr.mxu0 0.0
    %505 = vmatpush1.msra.mxu0 0.0
    %506 = vmatprep.subr.mxu0 0.0
    %507 = vmatpush1.msra.mxu0 0.0
    %508 = vmatprep.subr.mxu0 0.0
    %509 = vmatpush1.msra.mxu0 0.0
    %510 = vmatprep.subr.mxu0 0.0
    %511 = vmatpush1.msra.mxu0 0.0
    %512 = vmatprep.subr.mxu0 0.0
    %513 = vmatpush1.msra.mxu0 0.0
    %514 = vmatprep.subr.mxu0 0.0
    %515 = vmatpush1.msra.mxu0 0.0
    %516 = vmatprep.subr.mxu0 0.0
    %517 = vmatpush1.msra.mxu0 0.0
    %518 = vmatprep.subr.mxu0 0.0
    %519 = vmatpush1.msra.mxu0 0.0
    %520 = vmatprep.subr.mxu0 0.0
    %521 = vmatpush1.msra.mxu0 0.0
    %522 = vmatprep.subr.mxu0 0.0
    %523 = vmatpush1.msra.mxu0 0.0
    %524 = vmatprep.subr.mxu0 0.0
    %525 = vmatpush1.msra.mxu0 0.0
    %526 = vmatprep.subr.mxu0 0.0
    %527 = vmatpush1.msra.mxu0 0.0
    %528 = vmatprep.subr.mxu0 0.0
    %529 = vmatpush1.msra.mxu0 0.0
    %530 = vmatprep.subr.mxu0 0.0
    %531 = vmatpush1.msra.mxu0 0.0
    %532 = vmatprep.mubr.f32.mxu0 0.0
    %533 = vmatmul.mubr.f32.gmra.mrb[0].mxu0 %v466
    %v534 = vpop.f32.mrb[0].mxu0
    %v535 = vadd.f32 0.0, %v534
    %v536 = vpop.f32.mrb[0].mxu0
    %537 = vdwg.mxu0
    %539 = vrot.lane.b32.xlu0 %v535, 40
    %v540 = vpop.permute.xlu0 %539
    %v542 = vadd.f32 %v355, %v540
    %v543 = vxor.u32 %v542, 2147483648
    %v544 = vmul.f32 %v543, 1.442695
    %v545 = vpow.pop %v544
    %v546 = vadd.f32 %v545, 1.0
    %v547 = vrcp.pop %v546
    %v548 = vmul.f32 1.0, %v547
    %v549 = vtanh.pop %v542
    %551 = vrot.lane.b32.xlu0 %v456, 40
    %v552 = vpop.permute.xlu0 %551
    %v554 = vmul.f32 %v548, %v552
    %556 = vrot.lane.b32.xlu0 %v549, 108
    %v557 = vpop.permute.xlu0 %556
    %v559 = vmul.f32 %v548, %v557
    %561 = vrot.lane.b32.xlu0 %v559, 10
    %v562 = vpop.permute.xlu0 %561
    %v564 = vadd.f32 %v554, %v562
    %v565 = vtanh.pop %v564
    %567 = vrot.lane.b32.xlu0 %v565, 20
    %v568 = vpop.permute.xlu0 %567
    %v570 = vmul.f32 %v548, %v568
    %572 = vrot.lane.b32.xlu0 %v570, 58
    %v573 = vpop.permute.xlu0 %572
    %v574 = vsel %vm361, %v573, 0
    %576 = vmatprep.subr.mxu0 0.0
    %577 = vmatpush1.msra.mxu0 %v359
    %578 = vmatprep.subr.mxu0 0.0
    %579 = vmatpush1.msra.mxu0 %v366
    %580 = vmatprep.subr.mxu0 0.0
    %581 = vmatpush1.msra.mxu0 0.0
    %582 = vmatprep.subr.mxu0 0.0
    %583 = vmatpush1.msra.mxu0 0.0
    %584 = vmatprep.subr.mxu0 0.0
    %585 = vmatpush1.msra.mxu0 0.0
    %586 = vmatprep.subr.mxu0 0.0
    %587 = vmatpush1.msra.mxu0 0.0
    %588 = vmatprep.subr.mxu0 0.0
    %589 = vmatpush1.msra.mxu0 0.0
    %590 = vmatprep.subr.mxu0 0.0
    %591 = vmatpush1.msra.mxu0 0.0
    %592 = vmatprep.subr.mxu0 0.0
    %593 = vmatpush1.msra.mxu0 0.0
    %594 = vmatprep.subr.mxu0 0.0
    %595 = vmatpush1.msra.mxu0 0.0
    %596 = vmatprep.subr.mxu0 0.0
    %597 = vmatpush1.msra.mxu0 0.0
    %598 = vmatprep.subr.mxu0 0.0
    %599 = vmatpush1.msra.mxu0 0.0
    %600 = vmatprep.subr.mxu0 0.0
    %601 = vmatpush1.msra.mxu0 0.0
    %602 = vmatprep.subr.mxu0 0.0
    %603 = vmatpush1.msra.mxu0 0.0
    %604 = vmatprep.subr.mxu0 0.0
    %605 = vmatpush1.msra.mxu0 0.0
    %606 = vmatprep.subr.mxu0 0.0
    %607 = vmatpush1.msra.mxu0 0.0
    %608 = vmatprep.subr.mxu0 0.0
    %609 = vmatpush1.msra.mxu0 0.0
    %610 = vmatprep.subr.mxu0 0.0
    %611 = vmatpush1.msra.mxu0 0.0
    %612 = vmatprep.subr.mxu0 0.0
    %613 = vmatpush1.msra.mxu0 0.0
    %614 = vmatprep.subr.mxu0 0.0
    %615 = vmatpush1.msra.mxu0 0.0
    %616 = vmatprep.subr.mxu0 0.0
    %617 = vmatpush1.msra.mxu0 0.0
    %618 = vmatprep.subr.mxu0 0.0
    %619 = vmatpush1.msra.mxu0 0.0
    %620 = vmatprep.subr.mxu0 0.0
    %621 = vmatpush1.msra.mxu0 0.0
    %622 = vmatprep.subr.mxu0 0.0
    %623 = vmatpush1.msra.mxu0 0.0
    %624 = vmatprep.subr.mxu0 0.0
    %625 = vmatpush1.msra.mxu0 0.0
    %626 = vmatprep.subr.mxu0 0.0
    %627 = vmatpush1.msra.mxu0 0.0
    %628 = vmatprep.subr.mxu0 0.0
    %629 = vmatpush1.msra.mxu0 0.0
    %630 = vmatprep.subr.mxu0 0.0
    %631 = vmatpush1.msra.mxu0 0.0
    %632 = vmatprep.subr.mxu0 0.0
    %633 = vmatpush1.msra.mxu0 0.0
    %634 = vmatprep.subr.mxu0 0.0
    %635 = vmatpush1.msra.mxu0 0.0
    %636 = vmatprep.subr.mxu0 0.0
    %637 = vmatpush1.msra.mxu0 0.0
    %638 = vmatprep.subr.mxu0 0.0
    %639 = vmatpush1.msra.mxu0 0.0
    %640 = vmatprep.mubr.f32.mxu0 0.0
    %641 = vmatmul.mubr.f32.gmra.mrb[0].mxu0 %v574
    %v642 = vpop.f32.mrb[0].mxu0
    %v643 = vadd.f32 0.0, %v642
    %v644 = vpop.f32.mrb[0].mxu0
    %645 = vdwg.mxu0
    %647 = vrot.lane.b32.xlu0 %v643, 80
    %v648 = vpop.permute.xlu0 %647
    %v650 = vadd.f32 %v355, %v648
    %v651 = vxor.u32 %v650, 2147483648
    %v652 = vmul.f32 %v651, 1.442695
    %v653 = vpow.pop %v652
    %v654 = vadd.f32 %v653, 1.0
    %v655 = vrcp.pop %v654
    %v656 = vmul.f32 1.0, %v655
    %v657 = vtanh.pop %v650
    %659 = vrot.lane.b32.xlu0 %v564, 40
    %v660 = vpop.permute.xlu0 %659
    %v662 = vmul.f32 %v656, %v660
    %664 = vrot.lane.b32.xlu0 %v657, 108
    %v665 = vpop.permute.xlu0 %664
    %v667 = vmul.f32 %v656, %v665
    %669 = vrot.lane.b32.xlu0 %v667, 10
    %v670 = vpop.permute.xlu0 %669
    %v672 = vadd.f32 %v662, %v670
    %v673 = vtanh.pop %v672
    %675 = vrot.lane.b32.xlu0 %v673, 20
    %v676 = vpop.permute.xlu0 %675
    %v678 = vmul.f32 %v656, %v676
    %680 = vrot.lane.b32.xlu0 %v678, 18
    %v681 = vpop.permute.xlu0 %680
    %v682 = vsel %vm361, %v681, 0
    %684 = vmatprep.subr.mxu0 0.0
    %685 = vmatpush1.msra.mxu0 %v359
    %686 = vmatprep.subr.mxu0 0.0
    %687 = vmatpush1.msra.mxu0 %v366
    %688 = vmatprep.subr.mxu0 0.0
    %689 = vmatpush1.msra.mxu0 0.0
    %690 = vmatprep.subr.mxu0 0.0
    %691 = vmatpush1.msra.mxu0 0.0
    %692 = vmatprep.subr.mxu0 0.0
    %693 = vmatpush1.msra.mxu0 0.0
    %694 = vmatprep.subr.mxu0 0.0
    %695 = vmatpush1.msra.mxu0 0.0
    %696 = vmatprep.subr.mxu0 0.0
    %697 = vmatpush1.msra.mxu0 0.0
    %698 = vmatprep.subr.mxu0 0.0
    %699 = vmatpush1.msra.mxu0 0.0
    %700 = vmatprep.subr.mxu0 0.0
    %701 = vmatpush1.msra.mxu0 0.0
    %702 = vmatprep.subr.mxu0 0.0
    %703 = vmatpush1.msra.mxu0 0.0
    %704 = vmatprep.subr.mxu0 0.0
    %705 = vmatpush1.msra.mxu0 0.0
    %706 = vmatprep.subr.mxu0 0.0
    %707 = vmatpush1.msra.mxu0 0.0
    %708 = vmatprep.subr.mxu0 0.0
    %709 = vmatpush1.msra.mxu0 0.0
    %710 = vmatprep.subr.mxu0 0.0
    %711 = vmatpush1.msra.mxu0 0.0
    %712 = vmatprep.subr.mxu0 0.0
    %713 = vmatpush1.msra.mxu0 0.0
    %714 = vmatprep.subr.mxu0 0.0
    %715 = vmatpush1.msra.mxu0 0.0
    %716 = vmatprep.subr.mxu0 0.0
    %717 = vmatpush1.msra.mxu0 0.0
    %718 = vmatprep.subr.mxu0 0.0
    %719 = vmatpush1.msra.mxu0 0.0
    %720 = vmatprep.subr.mxu0 0.0
    %721 = vmatpush1.msra.mxu0 0.0
    %722 = vmatprep.subr.mxu0 0.0
    %723 = vmatpush1.msra.mxu0 0.0
    %724 = vmatprep.subr.mxu0 0.0
    %725 = vmatpush1.msra.mxu0 0.0
    %726 = vmatprep.subr.mxu0 0.0
    %727 = vmatpush1.msra.mxu0 0.0
    %728 = vmatprep.subr.mxu0 0.0
    %729 = vmatpush1.msra.mxu0 0.0
    %730 = vmatprep.subr.mxu0 0.0
    %731 = vmatpush1.msra.mxu0 0.0
    %732 = vmatprep.subr.mxu0 0.0
    %733 = vmatpush1.msra.mxu0 0.0
    %734 = vmatprep.subr.mxu0 0.0
    %735 = vmatpush1.msra.mxu0 0.0
    %736 = vmatprep.subr.mxu0 0.0
    %737 = vmatpush1.msra.mxu0 0.0
    %738 = vmatprep.subr.mxu0 0.0
    %739 = vmatpush1.msra.mxu0 0.0
    %740 = vmatprep.subr.mxu0 0.0
    %741 = vmatpush1.msra.mxu0 0.0
    %742 = vmatprep.subr.mxu0 0.0
    %743 = vmatpush1.msra.mxu0 0.0
    %744 = vmatprep.subr.mxu0 0.0
    %745 = vmatpush1.msra.mxu0 0.0
    %746 = vmatprep.subr.mxu0 0.0
    %747 = vmatpush1.msra.mxu0 0.0
    %748 = vmatprep.mubr.f32.mxu0 0.0
    %749 = vmatmul.mubr.f32.gmra.mrb[0].mxu0 %v682
    %v750 = vpop.f32.mrb[0].mxu0
    %v751 = vadd.f32 0.0, %v750
    %v752 = vpop.f32.mrb[0].mxu0
    %753 = vdwg.mxu0
    %755 = vrot.lane.b32.xlu0 %v751, 120
    %v756 = vpop.permute.xlu0 %755
    %v758 = vadd.f32 %v355, %v756
    %v759 = vadd.f32 %v357, %v756
    %v760 = vxor.u32 %v758, 2147483648
    %v761 = vxor.u32 %v759, 2147483648
    %v762 = vmul.f32 %v760, 1.442695
    %v763 = vpow.pop %v762
    %v764 = vmul.f32 %v761, 1.442695
    %v765 = vpow.pop %v764
    %v766 = vadd.f32 %v763, 1.0
    %v767 = vadd.f32 %v765, 1.0
    %v768 = vrcp.pop %v766
    %v769 = vmul.f32 1.0, %v768
    %v770 = vrcp.pop %v767
    %v771 = vmul.f32 1.0, %v770
    %v772 = vtanh.pop %v759
    %774 = vrot.lane.b32.xlu0 %v672, 40
    %v775 = vpop.permute.xlu0 %774
    %v777 = vmul.f32 %v771, %v775
    %779 = vrot.lane.b32.xlu0 %v772, 108
    %v780 = vpop.permute.xlu0 %779
    %v782 = vmul.f32 %v769, %v780
    %v783 = vmul.f32 %v771, %v780
    %786 = vrot.lane.b32.xlu0 %v782, 10
    %v787 = vpop.permute.xlu0 %786
    %788 = vrot.lane.b32.xlu0 %v783, 10
    %v789 = vpop.permute.xlu0 %788
    %v790 = vsel %vm361, %v787, %v789
    %v792 = vadd.f32 %v777, %v790
    %v793 = vtanh.pop %v792
    %795 = vrot.lane.b32.xlu0 %v793, 20
    %v796 = vpop.permute.xlu0 %795
    %v798 = vmul.f32 %v771, %v796
    %800 = vrot.lane.b32.xlu0 %v798, 106
    %v801 = vpop.permute.xlu0 %800
    %v802 = vsel %vm361, %v801, 0
    %804 = vmatprep.subr.mxu0 0.0
    %805 = vmatpush1.msra.mxu0 %v359
    %806 = vmatprep.subr.mxu0 0.0
    %807 = vmatpush1.msra.mxu0 %v366
    %808 = vmatprep.subr.mxu0 0.0
    %809 = vmatpush1.msra.mxu0 0.0
    %810 = vmatprep.subr.mxu0 0.0
    %811 = vmatpush1.msra.mxu0 0.0
    %812 = vmatprep.subr.mxu0 0.0
    %813 = vmatpush1.msra.mxu0 0.0
    %814 = vmatprep.subr.mxu0 0.0
    %815 = vmatpush1.msra.mxu0 0.0
    %816 = vmatprep.subr.mxu0 0.0
    %817 = vmatpush1.msra.mxu0 0.0
    %818 = vmatprep.subr.mxu0 0.0
    %819 = vmatpush1.msra.mxu0 0.0
    %820 = vmatprep.subr.mxu0 0.0
    %821 = vmatpush1.msra.mxu0 0.0
    %822 = vmatprep.subr.mxu0 0.0
    %823 = vmatpush1.msra.mxu0 0.0
    %824 = vmatprep.subr.mxu0 0.0
    %825 = vmatpush1.msra.mxu0 0.0
    %826 = vmatprep.subr.mxu0 0.0
    %827 = vmatpush1.msra.mxu0 0.0
    %828 = vmatprep.subr.mxu0 0.0
    %829 = vmatpush1.msra.mxu0 0.0
    %830 = vmatprep.subr.mxu0 0.0
    %831 = vmatpush1.msra.mxu0 0.0
    %832 = vmatprep.subr.mxu0 0.0
    %833 = vmatpush1.msra.mxu0 0.0
    %834 = vmatprep.subr.mxu0 0.0
    %835 = vmatpush1.msra.mxu0 0.0
    %836 = vmatprep.subr.mxu0 0.0
    %837 = vmatpush1.msra.mxu0 0.0
    %838 = vmatprep.subr.mxu0 0.0
    %839 = vmatpush1.msra.mxu0 0.0
    %840 = vmatprep.subr.mxu0 0.0
    %841 = vmatpush1.msra.mxu0 0.0
    %842 = vmatprep.subr.mxu0 0.0
    %843 = vmatpush1.msra.mxu0 0.0
    %844 = vmatprep.subr.mxu0 0.0
    %845 = vmatpush1.msra.mxu0 0.0
    %846 = vmatprep.subr.mxu0 0.0
    %847 = vmatpush1.msra.mxu0 0.0
    %848 = vmatprep.subr.mxu0 0.0
    %849 = vmatpush1.msra.mxu0 0.0
    %850 = vmatprep.subr.mxu0 0.0
    %851 = vmatpush1.msra.mxu0 0.0
    %852 = vmatprep.subr.mxu0 0.0
    %853 = vmatpush1.msra.mxu0 0.0
    %854 = vmatprep.subr.mxu0 0.0
    %855 = vmatpush1.msra.mxu0 0.0
    %856 = vmatprep.subr.mxu0 0.0
    %857 = vmatpush1.msra.mxu0 0.0
    %858 = vmatprep.subr.mxu0 0.0
    %859 = vmatpush1.msra.mxu0 0.0
    %860 = vmatprep.subr.mxu0 0.0
    %861 = vmatpush1.msra.mxu0 0.0
    %862 = vmatprep.subr.mxu0 0.0
    %863 = vmatpush1.msra.mxu0 0.0
    %864 = vmatprep.subr.mxu0 0.0
    %865 = vmatpush1.msra.mxu0 0.0
    %866 = vmatprep.subr.mxu0 0.0
    %867 = vmatpush1.msra.mxu0 0.0
    %868 = vmatprep.mubr.f32.mxu0 0.0
    %869 = vmatmul.mubr.f32.gmra.mrb[0].mxu0 %v802
    %v870 = vpop.f32.mrb[0].mxu0
    %v871 = vadd.f32 0.0, %v870
    %v872 = vpop.f32.mrb[0].mxu0
    %873 = vdwg.mxu0
    %875 = vrot.lane.b32.xlu0 %v871, 32
    %v876 = vpop.permute.xlu0 %875
    %v878 = vadd.f32 %v357, %v876
    %v879 = vxor.u32 %v878, 2147483648
    %v880 = vmul.f32 %v879, 1.442695
    %v881 = vpow.pop %v880
    %v882 = vadd.f32 %v881, 1.0
    %v883 = vrcp.pop %v882
    %v884 = vmul.f32 1.0, %v883
    %v885 = vtanh.pop %v878
    %887 = vrot.lane.b32.xlu0 %v792, 40
    %v888 = vpop.permute.xlu0 %887
    %v890 = vmul.f32 %v884, %v888
    %892 = vrot.lane.b32.xlu0 %v885, 108
    %v893 = vpop.permute.xlu0 %892
    %v895 = vmul.f32 %v884, %v893
    %897 = vrot.lane.b32.xlu0 %v895, 10
    %v898 = vpop.permute.xlu0 %897
    %v900 = vadd.f32 %v890, %v898
    %v901 = vtanh.pop %v900
    %903 = vrot.lane.b32.xlu0 %v901, 20
    %v904 = vpop.permute.xlu0 %903
    %v906 = vmul.f32 %v884, %v904
    %v907 = vld [vmem:[%s8] sm:$0xff]
    %v908 = vld [vmem:[%s8 + $0x8] sm:$0x3]
    %v909 = vld [vmem:[%s9] sm:$0x1]
    %v911 = vlaneseq
    %v912 = vshrl.u32 %v911, 7
    %v913 = vsub.s32 0, %v912
    %v914 = vrot.slane %v909, %v913
    %917 = vrot.lane.b32.xlu0 %v906, 66
    %v918 = vpop.permute.xlu0 %917
    %v919 = vsel %vm361, %v918, 0
    %v922 = vsel %vm281, %v908, 0
    %924 = vmatprep.subr.mxu0 0.0
    %925 = vmatpush1.msra.mxu0 %v907
    %926 = vmatprep.subr.mxu0 0.0
    %927 = vmatpush1.msra.mxu0 %v922
    %928 = vmatprep.subr.mxu0 0.0
    %929 = vmatpush1.msra.mxu0 0.0
    %930 = vmatprep.subr.mxu0 0.0
    %931 = vmatpush1.msra.mxu0 0.0
    %932 = vmatprep.subr.mxu0 0.0
    %933 = vmatpush1.msra.mxu0 0.0
    %934 = vmatprep.subr.mxu0 0.0
    %935 = vmatpush1.msra.mxu0 0.0
    %936 = vmatprep.subr.mxu0 0.0
    %937 = vmatpush1.msra.mxu0 0.0
    %938 = vmatprep.subr.mxu0 0.0
    %939 = vmatpush1.msra.mxu0 0.0
    %940 = vmatprep.subr.mxu0 0.0
    %941 = vmatpush1.msra.mxu0 0.0
    %942 = vmatprep.subr.mxu0 0.0
    %943 = vmatpush1.msra.mxu0 0.0
    %944 = vmatprep.subr.mxu0 0.0
    %945 = vmatpush1.msra.mxu0 0.0
    %946 = vmatprep.subr.mxu0 0.0
    %947 = vmatpush1.msra.mxu0 0.0
    %948 = vmatprep.subr.mxu0 0.0
    %949 = vmatpush1.msra.mxu0 0.0
    %950 = vmatprep.subr.mxu0 0.0
    %951 = vmatpush1.msra.mxu0 0.0
    %952 = vmatprep.subr.mxu0 0.0
    %953 = vmatpush1.msra.mxu0 0.0
    %954 = vmatprep.subr.mxu0 0.0
    %955 = vmatpush1.msra.mxu0 0.0
    %956 = vmatprep.subr.mxu0 0.0
    %957 = vmatpush1.msra.mxu0 0.0
    %958 = vmatprep.subr.mxu0 0.0
    %959 = vmatpush1.msra.mxu0 0.0
    %960 = vmatprep.subr.mxu0 0.0
    %961 = vmatpush1.msra.mxu0 0.0
    %962 = vmatprep.subr.mxu0 0.0
    %963 = vmatpush1.msra.mxu0 0.0
    %964 = vmatprep.subr.mxu0 0.0
    %965 = vmatpush1.msra.mxu0 0.0
    %966 = vmatprep.subr.mxu0 0.0
    %967 = vmatpush1.msra.mxu0 0.0
    %968 = vmatprep.subr.mxu0 0.0
    %969 = vmatpush1.msra.mxu0 0.0
    %970 = vmatprep.subr.mxu0 0.0
    %971 = vmatpush1.msra.mxu0 0.0
    %972 = vmatprep.subr.mxu0 0.0
    %973 = vmatpush1.msra.mxu0 0.0
    %974 = vmatprep.subr.mxu0 0.0
    %975 = vmatpush1.msra.mxu0 0.0
    %976 = vmatprep.subr.mxu0 0.0
    %977 = vmatpush1.msra.mxu0 0.0
    %978 = vmatprep.subr.mxu0 0.0
    %979 = vmatpush1.msra.mxu0 0.0
    %980 = vmatprep.subr.mxu0 0.0
    %981 = vmatpush1.msra.mxu0 0.0
    %982 = vmatprep.subr.mxu0 0.0
    %983 = vmatpush1.msra.mxu0 0.0
    %984 = vmatprep.subr.mxu0 0.0
    %985 = vmatpush1.msra.mxu0 0.0
    %986 = vmatprep.subr.mxu0 0.0
    %987 = vmatpush1.msra.mxu0 0.0
    %988 = vmatprep.mubr.f32.mxu0 0.0
    %989 = vmatmul.mubr.f32.gmra.mrb[0].mxu0 %v919
    %v990 = vpop.f32.mrb[0].mxu0
    %v991 = vadd.f32 %v914, %v990
    %v992 = vpop.f32.mrb[0].mxu0
    %993 = vdwg.mxu0
    %vm994 = vcmask 23552
    %v995 = vsel %vm994, %v991, -inf
    %996 = vmax.xlane.f32.xlu0 %v995
    %v997 = vpop.xlane.xlu0 %996
    %v998 = vsub.f32 %v991, %v997
    %v999 = vmul.f32 %v998, 1.442695
    %v1000 = vpow.pop %v999
    %v1001 = vsel %vm994, %v1000, 0.0
    %1002 = vadd.xlane.f32.xlu0 %v1001
    %v1003 = vpop.xlane.xlu0 %1002
    %v1004 = vrcp.pop %v1003
    %v1005 = vmul.f32 %v1000, %v1004
    %1006 = vst.msk [vmem:[%s10] sm:$0xff] %vm994, %v1005
    // Predicated region
    $region54: #{tpu_custom_call.1} parent=1 // pred_check
      _
    $region55: #{tpu_custom_call.1} parent=1 // pred_check_branch
      %1008 = sbr.rel (0) target = $region57
    $region56: #{tpu_custom_call.1} parent=1 // pred_region
      _
    $region57: #{tpu_custom_call.1} parent=1 // pred_fallthru
      _
    // Predicated region
    $region58: #{tpu_custom_call.1} parent=1 // pred_check
      _
    $region59: #{tpu_custom_call.1} parent=1 // pred_check_branch
      %1010 = sbr.rel (0) target = $region61
    $region60: #{tpu_custom_call.1} parent=1 // pred_region
      _
    $region61: #{tpu_custom_call.1} parent=1 // pred_fallthru
      _
    %1011 = vsyncpa [#allocation3], 1
    %1012 = vsyncpa [#allocation5], 1

</llo_original>
